<compile_context>
chip_gen: v7x
topology: tpu7x:2x2x1
jax: 0.10.0
libtpu: 0.0.40
codegen_flags: <defaults>
</compile_context>

<pallas_src>
import functools

import jax
import jax.numpy as jnp
from jax.experimental import pallas as pl
from jax.experimental.pallas import tpu as pltpu


_VMEM_LIMIT_BYTES = 32 * 1024 * 1024   # explicit scoped-VMEM cap; safe on v5e/v6e/v7x
_BLOCK_BUDGET_BYTES = 4 * 1024 * 1024  # per x block; ~4x live with in+out double-buffering


# ---------------------------------------------------------------------------
# Path A: fused single pass (whole (C, L) row per batch element fits VMEM).
# ---------------------------------------------------------------------------
def _se_fused_kernel(x_ref, w1t_ref, w2t_ref, o_ref):
    # x_ref: (Bt, C, L); w1t_ref: (C, H); w2t_ref: (H, C); o_ref: (Bt, C, L)
    x = x_ref[...]
    # Squeeze: global average pool over L, accumulated in f32.
    y = jnp.mean(x, axis=-1, dtype=jnp.float32)                 # (Bt, C)
    # Excitation: batched over the Bt tile so the MXU sees Bt rows, not 1.
    h = jnp.dot(y.astype(w1t_ref.dtype), w1t_ref[...],
                preferred_element_type=jnp.float32)             # (Bt, H)
    h = jnp.maximum(h, 0.0)
    s = jnp.dot(h.astype(w2t_ref.dtype), w2t_ref[...],
                preferred_element_type=jnp.float32)             # (Bt, C)
    s = jax.nn.sigmoid(s)
    # Scale: broadcast gate over L; multiply/store in the input dtype.
    o_ref[...] = (x * s.astype(x.dtype)[:, :, None]).astype(o_ref.dtype)


def _se_fused(x, w1t, w2t, bt):
    B, C, L = x.shape
    H = w1t.shape[1]
    return pl.pallas_call(
        _se_fused_kernel,
        out_shape=jax.ShapeDtypeStruct((B, C, L), x.dtype),
        grid_spec=pltpu.PrefetchScalarGridSpec(
            num_scalar_prefetch=0,
            grid=(B // bt,),
            in_specs=[
                pl.BlockSpec((bt, C, L), lambda b: (b, 0, 0)),
                # Constant index_map -> weights stay VMEM-resident (no re-DMA).
                pl.BlockSpec((C, H), lambda b: (0, 0)),
                pl.BlockSpec((H, C), lambda b: (0, 0)),
            ],
            out_specs=pl.BlockSpec((bt, C, L), lambda b: (b, 0, 0)),
        ),
        compiler_params=pltpu.CompilerParams(
            dimension_semantics=("parallel",),
            vmem_limit_bytes=_VMEM_LIMIT_BYTES),
    )(x, w1t, w2t)


# ---------------------------------------------------------------------------
# Path B: two passes — (1) pooled-mean + MLP gate, (2) elementwise scale.
# ---------------------------------------------------------------------------
def _se_gate_kernel(x_ref, w1t_ref, w2t_ref, g_ref, acc_ref, *, inv_l):
    # x_ref: (Bt, C, Lt); g_ref: (Bt, C) f32 out; acc_ref: VMEM (Bt, C) f32
    li = pl.program_id(1)

    @pl.when(li == 0)
    def _():
        acc_ref[...] = jnp.zeros_like(acc_ref)

    acc_ref[...] += jnp.sum(x_ref[...], axis=-1, dtype=jnp.float32)

    @pl.when(li == pl.num_programs(1) - 1)
    def _():
        y = acc_ref[...] * inv_l                                  # (Bt, C) mean
        h = jnp.dot(y.astype(w1t_ref.dtype), w1t_ref[...],
                    preferred_element_type=jnp.float32)
        h = jnp.maximum(h, 0.0)
        s = jnp.dot(h.astype(w2t_ref.dtype), w2t_ref[...],
                    preferred_element_type=jnp.float32)
        g_ref[...] = jax.nn.sigmoid(s).astype(g_ref.dtype)


def _se_scale_kernel(x_ref, g_ref, o_ref):
    # x_ref: (Bt, C, Lt); g_ref: (Bt, C); o_ref: (Bt, C, Lt)
    x = x_ref[...]
    s = g_ref[...].astype(x.dtype)
    o_ref[...] = (x * s[:, :, None]).astype(o_ref.dtype)


def _se_two_pass(x, w1t, w2t, bt, lt):
    B, C, L = x.shape
    H = w1t.shape[1]
    nb, nl = B // bt, L // lt

    gate = pl.pallas_call(
        functools.partial(_se_gate_kernel, inv_l=1.0 / L),
        out_shape=jax.ShapeDtypeStruct((B, C), jnp.float32),
        grid_spec=pltpu.PrefetchScalarGridSpec(
            num_scalar_prefetch=0,
            grid=(nb, nl),                       # reduction (L) axis last
            in_specs=[
                pl.BlockSpec((bt, C, lt), lambda b, l: (b, 0, l)),
                pl.BlockSpec((C, H), lambda b, l: (0, 0)),
                pl.BlockSpec((H, C), lambda b, l: (0, 0)),
            ],
            out_specs=pl.BlockSpec((bt, C), lambda b, l: (b, 0)),
            scratch_shapes=[pltpu.VMEM((bt, C), jnp.float32)],
        ),
        compiler_params=pltpu.CompilerParams(
            dimension_semantics=("parallel", "arbitrary"),
            vmem_limit_bytes=_VMEM_LIMIT_BYTES),
    )(x, w1t, w2t)

    return pl.pallas_call(
        _se_scale_kernel,
        out_shape=jax.ShapeDtypeStruct((B, C, L), x.dtype),
        grid_spec=pltpu.PrefetchScalarGridSpec(
            num_scalar_prefetch=0,
            grid=(nb, nl),
            in_specs=[
                pl.BlockSpec((bt, C, lt), lambda b, l: (b, 0, l)),
                pl.BlockSpec((bt, C), lambda b, l: (b, 0)),
            ],
            out_specs=pl.BlockSpec((bt, C, lt), lambda b, l: (b, 0, l)),
        ),
        compiler_params=pltpu.CompilerParams(
            dimension_semantics=("parallel", "parallel"),
            vmem_limit_bytes=_VMEM_LIMIT_BYTES),
    )(x, gate)


# ---------------------------------------------------------------------------
# Tiling heuristics + public wrapper.
# ---------------------------------------------------------------------------
def _largest_divisor_leq(n, cap):
    cap = max(1, min(n, cap))
    for d in range(cap, 0, -1):
        if n % d == 0:
            return d
    return 1


def _pick_batch_tile_two_pass(B, bytes_per_row, budget):
    # The (bt, C) gate block needs bt % 8 == 0 or bt == B (sublane rule).
    cap = max(1, budget // max(1, bytes_per_row))
    if B <= cap:
        return B
    for d in range(min(B, cap), 7, -1):
        if B % d == 0 and d % 8 == 0:
            return d
    return 8 if B % 8 == 0 else B


def _pick_l_tile(L, C, itemsize, budget):
    # Lane-dense (multiple-of-128) L tiles when possible -> unmasked stores.
    if L % 128 == 0:
        max_lanes = max(128, (budget // (C * itemsize)) // 128 * 128)
        lt = min(L, max_lanes)
        while lt > 128 and L % lt != 0:
            lt -= 128
        if L % lt == 0:
            return lt
    # TODO(synk): huge L that is not a multiple of 128 would need a masked
    # partial-tile reduction; small/odd L just takes the full row.
    return L


def se_forward(x, w1, w2, *, force_two_pass=False,
               max_block_bytes=_BLOCK_BUDGET_BYTES):
    """x: (B, C, L); w1: (H, C) fc1 weight (PyTorch layout); w2: (C, H) fc2 weight."""
    B, C, L = x.shape
    w1t = jnp.transpose(w1)   # (C, H)
    w2t = jnp.transpose(w2)   # (H, C)
    itemsize = jnp.dtype(x.dtype).itemsize
    row_bytes = C * L * itemsize

    if row_bytes <= max_block_bytes and not force_two_pass:
        # Fused path: fuse batch elements up to the block budget; for larger
        # batches keep >= 2 grid steps so both v7x TensorCores stay busy.
        max_bt = max(1, max_block_bytes // row_bytes)
        if B >= 4:
            max_bt = min(max_bt, B // 2)
        bt = _largest_divisor_leq(B, max_bt)
        return _se_fused(x, w1t, w2t, bt)

    # Two-pass path: one extra read of x, but no "whole (C,L) row in VMEM"
    # constraint and lane-dense 128-multiple L tiles for the scale pass.
    lt = _pick_l_tile(L, C, itemsize, max_block_bytes)
    bt = _pick_batch_tile_two_pass(B, C * lt * itemsize, max_block_bytes)
    return _se_two_pass(x, w1t, w2t, bt, lt)


if __name__ == "__main__":
    # Module config: SE(out_dim=C, hidden_dim=32, expansion=0.25) -> H = 8
    B, C, L = 2, 16, 16
    out_dim = C
    hidden_dim = 32
    expansion = 0.25
    H = int(hidden_dim * expansion)

    key = jax.random.PRNGKey(0)
    kx, k1, k2, kx2 = jax.random.split(key, 4)
    x = jax.random.normal(kx, (B, C, L), dtype=jnp.float32)
    # Deterministic synthetic weights (PyTorch nn.Linear weight shapes, no bias).
    w1 = jax.random.normal(k1, (H, out_dim), dtype=jnp.float32) * (1.0 / out_dim ** 0.5)
    w2 = jax.random.normal(k2, (out_dim, H), dtype=jnp.float32) * (1.0 / H ** 0.5)

    def ref_se(xx):
        y = jnp.mean(xx, axis=-1)                     # (B, C)
        y = jnp.maximum(y @ w1.T, 0.0)                # (B, H)
        y = jax.nn.sigmoid(y @ w2.T)                  # (B, C)
        return xx * y[:, :, None]

    # Path A: fused single-pass kernel (batch elements fused per grid step).
    out = se_forward(x, w1, w2)
    jax.block_until_ready(out)
    assert jnp.allclose(out, ref_se(x), atol=1e-5, rtol=1e-5)

    # Path B: two-pass gate + scale kernel with lane-dense 128-wide L tiles
    # (small block budget forces multiple L reduction steps to exercise it).
    L2 = 256
    x2 = jax.random.normal(kx2, (B, C, L2), dtype=jnp.float32)
    out2 = se_forward(x2, w1, w2, force_two_pass=True, max_block_bytes=8 * 1024)
    jax.block_until_ready(out2)
    assert jnp.allclose(out2, ref_se(x2), atol=1e-5, rtol=1e-5)

    print("KERNEL_OK")
</pallas_src>

<mosaic_0001>
module attributes {stable_mosaic.version = 11 : i64} {
  func.func @_se_fused_kernel(%arg0: i32, %arg1: memref<2x16x16xf32, #tpu.memory_space<vmem>>, %arg2: memref<16x8xf32, #tpu.memory_space<vmem>>, %arg3: memref<8x16xf32, #tpu.memory_space<vmem>>, %arg4: memref<2x16x16xf32, #tpu.memory_space<vmem>>) attributes {dimension_semantics = [#tpu.dimension_semantics<parallel>], iteration_bounds = array<i64: 1>, scalar_prefetch = 0 : i64, scratch_operands = 0 : i64, tpu.core_type = #tpu.core_type<tc>, window_params = [{transform_indices = @transform_0, window_bounds = array<i64: 2, 16, 16>}, {pipeline_mode = #tpu.pipeline_mode<synchronous>, transform_indices = @transform_1, window_bounds = array<i64: 16, 8>}, {pipeline_mode = #tpu.pipeline_mode<synchronous>, transform_indices = @transform_2, window_bounds = array<i64: 8, 16>}, {transform_indices = @transform_3, window_bounds = array<i64: 2, 16, 16>}]} {
    %c0 = arith.constant 0 : index
    %c0_0 = arith.constant 0 : index
    %c0_1 = arith.constant 0 : index
    %0 = vector.load %arg1[%c0, %c0_0, %c0_1] : memref<2x16x16xf32, #tpu.memory_space<vmem>>, vector<2x16x16xf32>
    %cst = arith.constant dense<0.000000e+00> : vector<2x16xf32>
    %1 = vector.multi_reduction <add>, %0, %cst [2] : vector<2x16x16xf32> to vector<2x16xf32>
    %cst_2 = arith.constant 1.600000e+01 : f32
    %2 = vector.broadcast %cst_2 : f32 to vector<2x16xf32>
    %3 = arith.divf %1, %2 : vector<2x16xf32>
    %c0_3 = arith.constant 0 : index
    %c0_4 = arith.constant 0 : index
    %4 = vector.load %arg2[%c0_3, %c0_4] : memref<16x8xf32, #tpu.memory_space<vmem>>, vector<16x8xf32>
    %cst_5 = arith.constant dense<0.000000e+00> : vector<2x8xf32>
    %5 = tpu.matmul %3, %4, %cst_5 {dimension_numbers = #tpu.dot_dimension_numbers<[1], [0], [0], [1], [0, 0, 1, 1], [], []>} : vector<2x16xf32>, vector<16x8xf32>, vector<2x8xf32> -> vector<2x8xf32>
    %cst_6 = arith.constant 0.000000e+00 : f32
    %6 = vector.broadcast %cst_6 : f32 to vector<2x8xf32>
    %7 = arith.maximumf %5, %6 : vector<2x8xf32>
    %c0_7 = arith.constant 0 : index
    %c0_8 = arith.constant 0 : index
    %8 = vector.load %arg3[%c0_7, %c0_8] : memref<8x16xf32, #tpu.memory_space<vmem>>, vector<8x16xf32>
    %cst_9 = arith.constant dense<0.000000e+00> : vector<2x16xf32>
    %9 = tpu.matmul %7, %8, %cst_9 {dimension_numbers = #tpu.dot_dimension_numbers<[1], [0], [0], [1], [0, 0, 1, 1], [], []>} : vector<2x8xf32>, vector<8x16xf32>, vector<2x16xf32> -> vector<2x16xf32>
    %10 = arith.negf %9 : vector<2x16xf32>
    %11 = math.exp %10 : vector<2x16xf32>
    %cst_10 = arith.constant 1.000000e+00 : f32
    %12 = vector.broadcast %cst_10 : f32 to vector<2x16xf32>
    %13 = arith.addf %12, %11 : vector<2x16xf32>
    %14 = arith.divf %12, %13 : vector<2x16xf32>
    %15 = vector.shape_cast %14 : vector<2x16xf32> to vector<2x16x1xf32>
    %16 = vector.broadcast %15 : vector<2x16x1xf32> to vector<2x16x16xf32>
    %17 = arith.mulf %0, %16 : vector<2x16x16xf32>
    %c0_11 = arith.constant 0 : index
    %c0_12 = arith.constant 0 : index
    %c0_13 = arith.constant 0 : index
    %18 = vector.load %arg4[%c0_11, %c0_12, %c0_13] : memref<2x16x16xf32, #tpu.memory_space<vmem>>, vector<2x16x16xf32>
    tpu.vector_store %arg4[%c0_11, %c0_12, %c0_13], %17 {strides = array<i32>} : memref<2x16x16xf32, #tpu.memory_space<vmem>>, vector<2x16x16xf32>,
    return
  }
  func.func @transform_0(%arg0: i32) -> (i32, i32, i32) {
    %c0_i32 = arith.constant 0 : i32
    %c0_i32_0 = arith.constant 0 : i32
    %c0_i32_1 = arith.constant 0 : i32
    return %arg0, %c0_i32, %c0_i32_0 : i32, i32, i32
  }
  func.func @transform_1(%arg0: i32) -> (i32, i32) {
    %c0_i32 = arith.constant 0 : i32
    %c0_i32_0 = arith.constant 0 : i32
    %c0_i32_1 = arith.constant 0 : i32
    return %c0_i32, %c0_i32_0 : i32, i32
  }
  func.func @transform_2(%arg0: i32) -> (i32, i32) {
    %c0_i32 = arith.constant 0 : i32
    %c0_i32_0 = arith.constant 0 : i32
    %c0_i32_1 = arith.constant 0 : i32
    return %c0_i32, %c0_i32_0 : i32, i32
  }
  func.func @transform_3(%arg0: i32) -> (i32, i32, i32) {
    %c0_i32 = arith.constant 0 : i32
    %c0_i32_0 = arith.constant 0 : i32
    %c0_i32_1 = arith.constant 0 : i32
    return %arg0, %c0_i32, %c0_i32_0 : i32, i32, i32
  }
}

</mosaic_0001>

<llo_original>
// kernel: tpu_custom_call.1
$region0: #{tpu_custom_call.1}
  #allocation0 [shape = 'u32[]', space=smem, size = 0x4, offset = 0x4, fixed_abs, tag = 'smem constant byte address 0x4 - core index']
  #allocation1 [shape = 'u32[144,128]{1,0:T(1,128)}', space=vmem, size = 0x12000, scoped, tag = 'internal scratch']
  %s0 = inlined_call_operand.hbm [shape: f32[2,16,16], index: 0, kind: input, shape index: {}]
  %s1 = inlined_call_operand.vmem [shape: f32[16,8], index: 1, kind: input, shape index: {}]
  %s2 = inlined_call_operand.vmem [shape: f32[8,16], index: 2, kind: input, shape index: {}]
  %s3 = inlined_call_operand.hbm [shape: f32[2,16,16], index: 3, kind: output, shape index: {}]
  %s4 = sld [smem:[#allocation0]]
  $region26: #{tpu_custom_call.1} parent=0
    _
  %s6 = ssub.s32 1, %s4
  %s7 = scalar_select 0, %s6, %s4
  $region1: #{tpu_custom_call.1} parent=0
    #allocation2 [shape = 'u8[16384]{0}', space=vmem, size = 0x4000, scoped, tag = 'input window, operand 0, single buffered']
    #allocation3 [shape = 's32[1]{0}', space=sflag, size = 0x4, scoped, tag = 'scoped memory for tpu_custom_call.1']
    #allocation4 [shape = 's32[1]{0}', space=sflag, size = 0x4, scoped, tag = 'scoped memory for tpu_custom_call.1']
    #allocation5 [shape = 'u8[16384]{0}', space=vmem, size = 0x4000, scoped, tag = 'output window, operand 0, single buffered']
    %8 = vsyncpa [#allocation3], 0
    %9 = vsyncpa [#allocation4], 0
    // Predicated region
    $region2: #{tpu_custom_call.1} parent=1 // pred_check
      _
    $region3: #{tpu_custom_call.1} parent=1 // pred_check_branch
      %11 = sbr.rel (0) target = $region5
    $region4: #{tpu_custom_call.1} parent=1 // pred_region
      %s13 = ssub.s32 512, 512
      %14 = vsyncadd [#allocation3], %s13
      %s15 = sshll.u32 [#allocation2], 4
      %s16 = int_to_ptr.vmem [resolvable:$true] %s15
      %21 = dma.hbm_to_vmem [thread:$0]  %s0, 512, %s16, [#allocation3], 128, 128, 8
    $region5: #{tpu_custom_call.1} parent=1 // pred_fallthru
      _
    // Predicated region
    $region6: #{tpu_custom_call.1} parent=1 // pred_check
      _
    $region7: #{tpu_custom_call.1} parent=1 // pred_check_branch
      %23 = sbr.rel (0) target = $region9
    $region8: #{tpu_custom_call.1} parent=1 // pred_region
      _
    $region9: #{tpu_custom_call.1} parent=1 // pred_fallthru
      _
    // Predicated region
    $region10: #{tpu_custom_call.1} parent=1 // pred_check
      _
    $region11: #{tpu_custom_call.1} parent=1 // pred_check_branch
      %25 = sbr.rel (0) target = $region13
    $region12: #{tpu_custom_call.1} parent=1 // pred_region
      _
    $region13: #{tpu_custom_call.1} parent=1 // pred_fallthru
      _
    // Predicated region
    $region14: #{tpu_custom_call.1} parent=1 // pred_check
      _
    $region15: #{tpu_custom_call.1} parent=1 // pred_check_branch
      %27 = sbr.rel (0) target = $region17
    $region16: #{tpu_custom_call.1} parent=1 // pred_region
      %28 = dma.done [#allocation3], 512
    $region17: #{tpu_custom_call.1} parent=1 // pred_fallthru
      _
    %v29 = vld [vmem:[#allocation2] sm:$0xff]
    %v30 = vld [vmem:[#allocation2 + $0x8] sm:$0xff]
    %v31 = vld [vmem:[#allocation2 + $0x10] sm:$0xff]
    %v32 = vld [vmem:[#allocation2 + $0x18] sm:$0xff]
    %vm33 = vcmask 130048
    %v34 = vsel %vm33, %v29, 0.0
    %35 = vadd.xlane.f32.xlu0 %v34
    %v36 = vpop.xlane.xlu0 %35
    %v37 = vsel %vm33, %v30, 0.0
    %38 = vadd.xlane.f32.xlu0 %v37
    %v39 = vpop.xlane.xlu0 %38
    %v40 = vsel %vm33, %v31, 0.0
    %41 = vadd.xlane.f32.xlu0 %v40
    %v42 = vpop.xlane.xlu0 %41
    %v43 = vsel %vm33, %v32, 0.0
    %44 = vadd.xlane.f32.xlu0 %v43
    %v45 = vpop.xlane.xlu0 %44
    %v46 = vrcp.pop 16.0
    %v47 = vmul.f32 %v36, %v46
    %v48 = vmul.f32 %v39, %v46
    %v49 = vmul.f32 %v42, %v46
    %v50 = vmul.f32 %v45, %v46
    %v51 = vld [vmem:[%s1] sm:$0xff]
    %v52 = vld [vmem:[%s1 + $0x8] sm:$0xff]
    %v57 = vlaneseq
    %v58 = vand.u32 %v57, 127
    %v59 = vlaneseq
    %v60 = vshrl.u32 %v59, 7
    %v61 = vsub.s32 %v58, %v60
    %v62 = vrot.slane %v47, %v61
    %v63 = vadd.s32 %v58, 4294967288
    %v64 = vlaneseq
    %v65 = vshrl.u32 %v64, 7
    %v66 = vsub.s32 %v63, %v65
    %v67 = vrot.slane %v48, %v66
    %vm68 = vcmask 130112
    %v69 = vsel %vm68, %v67, %v62
    %v70 = vlaneseq
    %v71 = vshrl.u32 %v70, 7
    %v72 = vsub.s32 %v58, %v71
    %v73 = vrot.slane %v49, %v72
    %v74 = vlaneseq
    %v75 = vshrl.u32 %v74, 7
    %v76 = vsub.s32 %v63, %v75
    %v77 = vrot.slane %v50, %v76
    %v78 = vsel %vm68, %v77, %v73
    %vm79 = vcmask 1041409
    %v80 = vsel %vm79, %v78, %v69
    %v81 = vsel %vm33, %v80, 0
    %83 = vmatprep.subr.mxu0 0.0
    %84 = vmatpush1.msra.mxu0 %v51
    %85 = vmatprep.subr.mxu0 0.0
    %86 = vmatpush1.msra.mxu0 %v52
    %87 = vmatprep.subr.mxu0 0.0
    %88 = vmatpush1.msra.mxu0 0.0
    %89 = vmatprep.subr.mxu0 0.0
    %90 = vmatpush1.msra.mxu0 0.0
    %91 = vmatprep.subr.mxu0 0.0
    %92 = vmatpush1.msra.mxu0 0.0
    %93 = vmatprep.subr.mxu0 0.0
    %94 = vmatpush1.msra.mxu0 0.0
    %95 = vmatprep.subr.mxu0 0.0
    %96 = vmatpush1.msra.mxu0 0.0
    %97 = vmatprep.subr.mxu0 0.0
    %98 = vmatpush1.msra.mxu0 0.0
    %99 = vmatprep.subr.mxu0 0.0
    %100 = vmatpush1.msra.mxu0 0.0
    %101 = vmatprep.subr.mxu0 0.0
    %102 = vmatpush1.msra.mxu0 0.0
    %103 = vmatprep.subr.mxu0 0.0
    %104 = vmatpush1.msra.mxu0 0.0
    %105 = vmatprep.subr.mxu0 0.0
    %106 = vmatpush1.msra.mxu0 0.0
    %107 = vmatprep.subr.mxu0 0.0
    %108 = vmatpush1.msra.mxu0 0.0
    %109 = vmatprep.subr.mxu0 0.0
    %110 = vmatpush1.msra.mxu0 0.0
    %111 = vmatprep.subr.mxu0 0.0
    %112 = vmatpush1.msra.mxu0 0.0
    %113 = vmatprep.subr.mxu0 0.0
    %114 = vmatpush1.msra.mxu0 0.0
    %115 = vmatprep.subr.mxu0 0.0
    %116 = vmatpush1.msra.mxu0 0.0
    %117 = vmatprep.subr.mxu0 0.0
    %118 = vmatpush1.msra.mxu0 0.0
    %119 = vmatprep.subr.mxu0 0.0
    %120 = vmatpush1.msra.mxu0 0.0
    %121 = vmatprep.subr.mxu0 0.0
    %122 = vmatpush1.msra.mxu0 0.0
    %123 = vmatprep.subr.mxu0 0.0
    %124 = vmatpush1.msra.mxu0 0.0
    %125 = vmatprep.subr.mxu0 0.0
    %126 = vmatpush1.msra.mxu0 0.0
    %127 = vmatprep.subr.mxu0 0.0
    %128 = vmatpush1.msra.mxu0 0.0
    %129 = vmatprep.subr.mxu0 0.0
    %130 = vmatpush1.msra.mxu0 0.0
    %131 = vmatprep.subr.mxu0 0.0
    %132 = vmatpush1.msra.mxu0 0.0
    %133 = vmatprep.subr.mxu0 0.0
    %134 = vmatpush1.msra.mxu0 0.0
    %135 = vmatprep.subr.mxu0 0.0
    %136 = vmatpush1.msra.mxu0 0.0
    %137 = vmatprep.subr.mxu0 0.0
    %138 = vmatpush1.msra.mxu0 0.0
    %139 = vmatprep.subr.mxu0 0.0
    %140 = vmatpush1.msra.mxu0 0.0
    %141 = vmatprep.subr.mxu0 0.0
    %142 = vmatpush1.msra.mxu0 0.0
    %143 = vmatprep.subr.mxu0 0.0
    %144 = vmatpush1.msra.mxu0 0.0
    %145 = vmatprep.subr.mxu0 0.0
    %146 = vmatpush1.msra.mxu0 0.0
    %147 = vmatprep.mubr.f32.mxu0 0.0
    %148 = vmatmul.mubr.f32.gmra.mrb[0].mxu0 %v81
    %v149 = vpop.f32.mrb[0].mxu0
    %v150 = vadd.f32 0.0, %v149
    %v151 = vpop.f32.mrb[0].mxu0
    %152 = vdwg.mxu0
    %v153 = vmax.f32 %v150, 0.0
    %v154 = vld [vmem:[%s2] sm:$0xff]
    %vm155 = vcmask 64512
    %v157 = vsel %vm155, %v153, 0
    %159 = vmatprep.subr.mxu0 0.0
    %160 = vmatpush1.msra.mxu0 %v154
    %161 = vmatprep.subr.mxu0 0.0
    %162 = vmatpush1.msra.mxu0 0.0
    %163 = vmatprep.subr.mxu0 0.0
    %164 = vmatpush1.msra.mxu0 0.0
    %165 = vmatprep.subr.mxu0 0.0
    %166 = vmatpush1.msra.mxu0 0.0
    %167 = vmatprep.subr.mxu0 0.0
    %168 = vmatpush1.msra.mxu0 0.0
    %169 = vmatprep.subr.mxu0 0.0
    %170 = vmatpush1.msra.mxu0 0.0
    %171 = vmatprep.subr.mxu0 0.0
    %172 = vmatpush1.msra.mxu0 0.0
    %173 = vmatprep.subr.mxu0 0.0
    %174 = vmatpush1.msra.mxu0 0.0
    %175 = vmatprep.subr.mxu0 0.0
    %176 = vmatpush1.msra.mxu0 0.0
    %177 = vmatprep.subr.mxu0 0.0
    %178 = vmatpush1.msra.mxu0 0.0
    %179 = vmatprep.subr.mxu0 0.0
    %180 = vmatpush1.msra.mxu0 0.0
    %181 = vmatprep.subr.mxu0 0.0
    %182 = vmatpush1.msra.mxu0 0.0
    %183 = vmatprep.subr.mxu0 0.0
    %184 = vmatpush1.msra.mxu0 0.0
    %185 = vmatprep.subr.mxu0 0.0
    %186 = vmatpush1.msra.mxu0 0.0
    %187 = vmatprep.subr.mxu0 0.0
    %188 = vmatpush1.msra.mxu0 0.0
    %189 = vmatprep.subr.mxu0 0.0
    %190 = vmatpush1.msra.mxu0 0.0
    %191 = vmatprep.subr.mxu0 0.0
    %192 = vmatpush1.msra.mxu0 0.0
    %193 = vmatprep.subr.mxu0 0.0
    %194 = vmatpush1.msra.mxu0 0.0
    %195 = vmatprep.subr.mxu0 0.0
    %196 = vmatpush1.msra.mxu0 0.0
    %197 = vmatprep.subr.mxu0 0.0
    %198 = vmatpush1.msra.mxu0 0.0
    %199 = vmatprep.subr.mxu0 0.0
    %200 = vmatpush1.msra.mxu0 0.0
    %201 = vmatprep.subr.mxu0 0.0
    %202 = vmatpush1.msra.mxu0 0.0
    %203 = vmatprep.subr.mxu0 0.0
    %204 = vmatpush1.msra.mxu0 0.0
    %205 = vmatprep.subr.mxu0 0.0
    %206 = vmatpush1.msra.mxu0 0.0
    %207 = vmatprep.subr.mxu0 0.0
    %208 = vmatpush1.msra.mxu0 0.0
    %209 = vmatprep.subr.mxu0 0.0
    %210 = vmatpush1.msra.mxu0 0.0
    %211 = vmatprep.subr.mxu0 0.0
    %212 = vmatpush1.msra.mxu0 0.0
    %213 = vmatprep.subr.mxu0 0.0
    %214 = vmatpush1.msra.mxu0 0.0
    %215 = vmatprep.subr.mxu0 0.0
    %216 = vmatpush1.msra.mxu0 0.0
    %217 = vmatprep.subr.mxu0 0.0
    %218 = vmatpush1.msra.mxu0 0.0
    %219 = vmatprep.subr.mxu0 0.0
    %220 = vmatpush1.msra.mxu0 0.0
    %221 = vmatprep.subr.mxu0 0.0
    %222 = vmatpush1.msra.mxu0 0.0
    %223 = vmatprep.mubr.f32.mxu0 0.0
    %224 = vmatmul.mubr.f32.gmra.mrb[0].mxu0 %v157
    %v225 = vpop.f32.mrb[0].mxu0
    %v226 = vadd.f32 0.0, %v225
    %v227 = vpop.f32.mrb[0].mxu0
    %228 = vdwg.mxu0
    %v229 = vxor.u32 %v226, 2147483648
    %v230 = vmul.f32 %v229, 1.442695
    %v231 = vpow.pop %v230
    %v232 = vadd.f32 %v231, 1.0
    %v233 = vrcp.pop %v232
    %v234 = vmul.f32 1.0, %v233
    %v235 = vlaneseq
    %v236 = vshrl.u32 %v235, 7
    %v237 = vsub.s32 0, %v236
    %v238 = vrot.slane %v234, %v237
    %240 = vbcast.lane.b32.xlu0 %v238, 256
    %v241 = vpop.permute.xlu0 %240
    %s243 = sor.u32 256, 8
    %244 = vbcast.lane.b32.xlu0 %v238, %s243
    %v245 = vpop.permute.xlu0 %244
    %v246 = vlaneseq
    %v247 = vshrl.u32 %v246, 7
    %v248 = vsub.s32 1, %v247
    %v249 = vrot.slane %v234, %v248
    %251 = vbcast.lane.b32.xlu0 %v249, 256
    %v252 = vpop.permute.xlu0 %251
    %s254 = sor.u32 256, 8
    %255 = vbcast.lane.b32.xlu0 %v249, %s254
    %v256 = vpop.permute.xlu0 %255
    %v257 = vmul.f32 %v29, %v241
    %v258 = vmul.f32 %v30, %v245
    %v259 = vmul.f32 %v31, %v252
    %v260 = vmul.f32 %v32, %v256
    %261 = vst.msk [vmem:[#allocation5] sm:$0xff] %vm33, %v257
    %262 = vst.msk [vmem:[#allocation5 + $0x8] sm:$0xff] %vm33, %v258
    %263 = vst.msk [vmem:[#allocation5 + $0x10] sm:$0xff] %vm33, %v259
    %264 = vst.msk [vmem:[#allocation5 + $0x18] sm:$0xff] %vm33, %v260
    // Predicated region
    $region18: #{tpu_custom_call.1} parent=1 // pred_check
      _
    $region19: #{tpu_custom_call.1} parent=1 // pred_check_branch
      %266 = sbr.rel (0) target = $region21
    $region20: #{tpu_custom_call.1} parent=1 // pred_region
      %s268 = ssub.s32 512, 512
      %269 = vsyncadd [#allocation4], %s268
      %s270 = sshll.u32 [#allocation5], 4
      %s271 = int_to_ptr.vmem [resolvable:$true] %s270
      %276 = dma.vmem_to_hbm [thread:$0]  %s271, 512, %s3, [#allocation4], 128, 128, 8
    $region21: #{tpu_custom_call.1} parent=1 // pred_fallthru
      _
    // Predicated region
    $region22: #{tpu_custom_call.1} parent=1 // pred_check
      _
    $region23: #{tpu_custom_call.1} parent=1 // pred_check_branch
      %278 = sbr.rel (0) target = $region25
    $region24: #{tpu_custom_call.1} parent=1 // pred_region
      %279 = dma.done [#allocation4], 512
    $region25: #{tpu_custom_call.1} parent=1 // pred_fallthru
      _
    %280 = vsyncpa [#allocation3], 1
    %281 = vsyncpa [#allocation4], 1

</llo_original>
